<compile_context>
chip_gen: v5e
topology: v5e:2x2
jax: 0.10.0
libtpu: 0.0.40
codegen_flags: <defaults>
</compile_context>

<pallas_src>
import jax
import jax.numpy as jnp
from jax.experimental import pallas as pl
from jax.experimental.pallas import tpu as pltpu


def _round_up(n, m):
    return (n + m - 1) // m * m


def _softmax_lastdim(z):
    # Numerically-stable softmax over the last dim (PyTorch Softmax(dim=1) on [B, F]).
    m = jnp.max(z, axis=-1, keepdims=True)
    e = jnp.exp(z - m)
    return e * pl.reciprocal(jnp.sum(e, axis=-1, keepdims=True), approx=True)


def cnn_fusion_kernel(x_ref, p_ref, out_ref):
    x = x_ref[...]  # [TB, 32] float32

    # Layer 1, both heads fused: x @ [cw1 | dw1] + [cb1 | db1], then ReLU.
    w1 = p_ref[0:32, :]
    b1 = p_ref[80:81, :]
    hg = jnp.maximum(jnp.dot(x, w1, preferred_element_type=jnp.float32) + b1, 0.0)

    # Layer 2, block-diagonal: lanes 0:16 = class fc2, lanes 16:32 = domain fc2.
    w2 = p_ref[32:64, :]
    b2 = p_ref[81:82, :]
    z2 = jnp.dot(hg, w2, preferred_element_type=jnp.float32) + b2
    h2 = jnp.maximum(z2[:, 0:16], 0.0)   # class hidden (post-ReLU)
    logits_d = z2[:, 16:32]              # domain logits (no ReLU before softmax)

    # Layer 3, class head only.
    w3 = p_ref[64:80, 0:16]
    b3 = p_ref[82:83, 0:16]
    logits_c = jnp.dot(h2, w3, preferred_element_type=jnp.float32) + b3

    out = jnp.concatenate(
        [_softmax_lastdim(logits_c), _softmax_lastdim(logits_d)], axis=-1)
    out_ref[...] = out.astype(out_ref.dtype)


def pack_params(p):
    """Pack the 5 weight matrices and 5 biases into one [88, 32] buffer."""
    w1 = jnp.concatenate([p["cw1"], p["dw1"]], axis=1)           # [32, 32]
    w2 = jnp.zeros((32, 32), jnp.float32)
    w2 = w2.at[0:16, 0:16].set(p["cw2"]).at[16:32, 16:32].set(p["dw2"])
    w3 = jnp.pad(p["cw3"], ((0, 0), (0, 16)))                    # [16, 32]
    b1 = jnp.concatenate([p["cb1"], p["db1"]], axis=1)           # [1, 32]
    b2 = jnp.concatenate([p["cb2"], p["db2"]], axis=1)           # [1, 32]
    b3 = jnp.pad(p["cb3"], ((0, 0), (0, 16)))                    # [1, 32]
    packed = jnp.concatenate(
        [w1, w2, w3, b1, b2, b3, jnp.zeros((5, 32), jnp.float32)], axis=0)
    return packed                                                # [88, 32]


def cnn_fusion_forward(x, params, tb=1024):
    """x: [B, 32] float32. Returns (class_out [B,16], domain_out [B,16])."""
    B = x.shape[0]
    p_packed = pack_params(params)

    # Batch tile: multiple of 8 sublanes; cap at `tb` rows. Double-buffered
    # [TB,32] f32 in/out tiles stay far below VMEM limits on v5e/v6e/v7x.
    TB = min(tb, _round_up(B, 8))
    Bp = _round_up(B, TB)
    if Bp != B:
        x = jnp.pad(x, ((0, Bp - B), (0, 0)))   # padded rows are harmless; sliced off below

    fused = pl.pallas_call(
        cnn_fusion_kernel,
        out_shape=jax.ShapeDtypeStruct((Bp, 32), jnp.float32),
        grid=(Bp // TB,),
        in_specs=[
            pl.BlockSpec((TB, 32), lambda i: (i, 0)),   # x tile streams over batch
            pl.BlockSpec((88, 32), lambda i: (0, 0)),   # packed params, VMEM-resident
        ],
        out_specs=pl.BlockSpec((TB, 32), lambda i: (i, 0)),
        compiler_params=pltpu.CompilerParams(
            dimension_semantics=("parallel",)),          # 2 TCs on v7x, no-op elsewhere
    )(x, p_packed)

    return fused[:B, 0:16], fused[:B, 16:32]


def init_params(key):
    """Deterministic init mirroring nn.Linear shapes; stored as [in, out] + [1, out]."""
    def linear(k, fan_in, fan_out):
        kw, kb = jax.random.split(k)
        bound = 1.0 / jnp.sqrt(jnp.float32(fan_in))
        w = jax.random.uniform(kw, (fan_in, fan_out), jnp.float32, -bound, bound)
        b = jax.random.uniform(kb, (1, fan_out), jnp.float32, -bound, bound)
        return w, b

    keys = jax.random.split(key, 5)
    cw1, cb1 = linear(keys[0], 32, 16)
    cw2, cb2 = linear(keys[1], 16, 16)
    cw3, cb3 = linear(keys[2], 16, 16)
    dw1, db1 = linear(keys[3], 32, 16)
    dw2, db2 = linear(keys[4], 16, 16)
    return dict(cw1=cw1, cb1=cb1, cw2=cw2, cb2=cb2, cw3=cw3, cb3=cb3,
                dw1=dw1, db1=db1, dw2=dw2, db2=db2)


def reference_forward(x, p):
    """Plain-JAX reference of the PyTorch forward, for a correctness check."""
    h = jax.nn.relu(x @ p["cw1"] + p["cb1"])
    h = jax.nn.relu(h @ p["cw2"] + p["cb2"])
    c = jax.nn.softmax(h @ p["cw3"] + p["cb3"], axis=1)
    g = jax.nn.relu(x @ p["dw1"] + p["db1"])
    d = jax.nn.softmax(g @ p["dw2"] + p["db2"], axis=1)
    return c, d


if __name__ == "__main__":
    key = jax.random.PRNGKey(0)
    kx, kp = jax.random.split(key)

    B = 8  # small batch
    x = jax.random.normal(kx, (B, 32), jnp.float32)
    params = init_params(kp)

    class_out, domain_out = cnn_fusion_forward(x, params)
    class_out = jax.block_until_ready(class_out)
    domain_out = jax.block_until_ready(domain_out)

    # sanity check against pure-JAX reference (tolerance loosened slightly for
    # the approx-EUP reciprocal in the softmax denominator).
    c_ref, d_ref = reference_forward(x, params)
    assert class_out.shape == (B, 16) and domain_out.shape == (B, 16)
    assert jnp.allclose(class_out, c_ref, atol=5e-3, rtol=5e-3)
    assert jnp.allclose(domain_out, d_ref, atol=5e-3, rtol=5e-3)
    # softmax rows sum to ~1
    assert jnp.allclose(jnp.sum(class_out, axis=1), 1.0, atol=5e-3)
    assert jnp.allclose(jnp.sum(domain_out, axis=1), 1.0, atol=5e-3)

    print("KERNEL_OK")
</pallas_src>

<mosaic_0001>
module attributes {stable_mosaic.version = 11 : i64} {
  func.func @cnn_fusion_kernel(%arg0: i32, %arg1: memref<8x32xf32, #tpu.memory_space<vmem>>, %arg2: memref<88x32xf32, #tpu.memory_space<vmem>>, %arg3: memref<8x32xf32, #tpu.memory_space<vmem>>) attributes {dimension_semantics = [#tpu.dimension_semantics<parallel>], iteration_bounds = array<i64: 1>, scalar_prefetch = 0 : i64, scratch_operands = 0 : i64, tpu.core_type = #tpu.core_type<tc>, window_params = [{transform_indices = @transform_0, window_bounds = array<i64: 8, 32>}, {pipeline_mode = #tpu.pipeline_mode<synchronous>, transform_indices = @transform_1, window_bounds = array<i64: 88, 32>}, {transform_indices = @transform_2, window_bounds = array<i64: 8, 32>}]} {
    %c0 = arith.constant 0 : index
    %c0_0 = arith.constant 0 : index
    %0 = vector.load %arg1[%c0, %c0_0] : memref<8x32xf32, #tpu.memory_space<vmem>>, vector<8x32xf32>
    %c0_1 = arith.constant 0 : index
    %c0_2 = arith.constant 0 : index
    %1 = vector.load %arg2[%c0_1, %c0_2] : memref<88x32xf32, #tpu.memory_space<vmem>>, vector<32x32xf32>
    %c80 = arith.constant 80 : index
    %c0_3 = arith.constant 0 : index
    %2 = vector.load %arg2[%c80, %c0_3] : memref<88x32xf32, #tpu.memory_space<vmem>>, vector<1x32xf32>
    %cst = arith.constant dense<0.000000e+00> : vector<8x32xf32>
    %3 = tpu.matmul %0, %1, %cst {dimension_numbers = #tpu.dot_dimension_numbers<[1], [0], [0], [1], [0, 0, 1, 1], [], []>} : vector<8x32xf32>, vector<32x32xf32>, vector<8x32xf32> -> vector<8x32xf32>
    %4 = vector.broadcast %2 : vector<1x32xf32> to vector<8x32xf32>
    %5 = arith.addf %3, %4 : vector<8x32xf32>
    %cst_4 = arith.constant 0.000000e+00 : f32
    %6 = vector.broadcast %cst_4 : f32 to vector<8x32xf32>
    %7 = arith.maximumf %5, %6 : vector<8x32xf32>
    %c32 = arith.constant 32 : index
    %c0_5 = arith.constant 0 : index
    %8 = vector.load %arg2[%c32, %c0_5] : memref<88x32xf32, #tpu.memory_space<vmem>>, vector<32x32xf32>
    %c81 = arith.constant 81 : index
    %c0_6 = arith.constant 0 : index
    %9 = vector.load %arg2[%c81, %c0_6] : memref<88x32xf32, #tpu.memory_space<vmem>>, vector<1x32xf32>
    %cst_7 = arith.constant dense<0.000000e+00> : vector<8x32xf32>
    %10 = tpu.matmul %7, %8, %cst_7 {dimension_numbers = #tpu.dot_dimension_numbers<[1], [0], [0], [1], [0, 0, 1, 1], [], []>} : vector<8x32xf32>, vector<32x32xf32>, vector<8x32xf32> -> vector<8x32xf32>
    %11 = vector.broadcast %9 : vector<1x32xf32> to vector<8x32xf32>
    %12 = arith.addf %10, %11 : vector<8x32xf32>
    %13 = vector.extract_strided_slice %12 {offsets = [0, 0], sizes = [8, 16], strides = [1, 1]} : vector<8x32xf32> to vector<8x16xf32>
    %cst_8 = arith.constant 0.000000e+00 : f32
    %14 = vector.broadcast %cst_8 : f32 to vector<8x16xf32>
    %15 = arith.maximumf %13, %14 : vector<8x16xf32>
    %16 = vector.extract_strided_slice %12 {offsets = [0, 16], sizes = [8, 16], strides = [1, 1]} : vector<8x32xf32> to vector<8x16xf32>
    %c64 = arith.constant 64 : index
    %c0_9 = arith.constant 0 : index
    %17 = vector.load %arg2[%c64, %c0_9] : memref<88x32xf32, #tpu.memory_space<vmem>>, vector<16x16xf32>
    %c82 = arith.constant 82 : index
    %c0_10 = arith.constant 0 : index
    %18 = vector.load %arg2[%c82, %c0_10] : memref<88x32xf32, #tpu.memory_space<vmem>>, vector<1x16xf32>
    %cst_11 = arith.constant dense<0.000000e+00> : vector<8x16xf32>
    %19 = tpu.matmul %15, %17, %cst_11 {dimension_numbers = #tpu.dot_dimension_numbers<[1], [0], [0], [1], [0, 0, 1, 1], [], []>} : vector<8x16xf32>, vector<16x16xf32>, vector<8x16xf32> -> vector<8x16xf32>
    %20 = vector.broadcast %18 : vector<1x16xf32> to vector<8x16xf32>
    %21 = arith.addf %19, %20 : vector<8x16xf32>
    %cst_12 = arith.constant dense<0xFF800000> : vector<8xf32>
    %22 = vector.multi_reduction <maximumf>, %21, %cst_12 [1] : vector<8x16xf32> to vector<8xf32>
    %23 = vector.shape_cast %22 : vector<8xf32> to vector<8x1xf32>
    %24 = vector.broadcast %23 : vector<8x1xf32> to vector<8x16xf32>
    %25 = arith.subf %21, %24 : vector<8x16xf32>
    %26 = math.exp %25 : vector<8x16xf32>
    %cst_13 = arith.constant dense<0.000000e+00> : vector<8xf32>
    %27 = vector.multi_reduction <add>, %26, %cst_13 [1] : vector<8x16xf32> to vector<8xf32>
    %28 = vector.shape_cast %27 : vector<8xf32> to vector<8x1xf32>
    %29 = tpu.reciprocal %28 {approx = true} : vector<8x1xf32> -> vector<8x1xf32>
    %30 = vector.broadcast %29 : vector<8x1xf32> to vector<8x16xf32>
    %31 = arith.mulf %26, %30 : vector<8x16xf32>
    %cst_14 = arith.constant dense<0xFF800000> : vector<8xf32>
    %32 = vector.multi_reduction <maximumf>, %16, %cst_14 [1] : vector<8x16xf32> to vector<8xf32>
    %33 = vector.shape_cast %32 : vector<8xf32> to vector<8x1xf32>
    %34 = vector.broadcast %33 : vector<8x1xf32> to vector<8x16xf32>
    %35 = arith.subf %16, %34 : vector<8x16xf32>
    %36 = math.exp %35 : vector<8x16xf32>
    %cst_15 = arith.constant dense<0.000000e+00> : vector<8xf32>
    %37 = vector.multi_reduction <add>, %36, %cst_15 [1] : vector<8x16xf32> to vector<8xf32>
    %38 = vector.shape_cast %37 : vector<8xf32> to vector<8x1xf32>
    %39 = tpu.reciprocal %38 {approx = true} : vector<8x1xf32> -> vector<8x1xf32>
    %40 = vector.broadcast %39 : vector<8x1xf32> to vector<8x16xf32>
    %41 = arith.mulf %36, %40 : vector<8x16xf32>
    %42 = tpu.concatenate %31, %41 in 1 : vector<8x16xf32>, vector<8x16xf32> -> vector<8x32xf32>
    %c0_16 = arith.constant 0 : index
    %c0_17 = arith.constant 0 : index
    %43 = vector.load %arg3[%c0_16, %c0_17] : memref<8x32xf32, #tpu.memory_space<vmem>>, vector<8x32xf32>
    tpu.vector_store %arg3[%c0_16, %c0_17], %42 {strides = array<i32>} : memref<8x32xf32, #tpu.memory_space<vmem>>, vector<8x32xf32>,
    return
  }
  func.func @transform_0(%arg0: i32) -> (i32, i32) {
    %c0_i32 = arith.constant 0 : i32
    %c0_i32_0 = arith.constant 0 : i32
    return %arg0, %c0_i32 : i32, i32
  }
  func.func @transform_1(%arg0: i32) -> (i32, i32) {
    %c0_i32 = arith.constant 0 : i32
    %c0_i32_0 = arith.constant 0 : i32
    %c0_i32_1 = arith.constant 0 : i32
    return %c0_i32, %c0_i32_0 : i32, i32
  }
  func.func @transform_2(%arg0: i32) -> (i32, i32) {
    %c0_i32 = arith.constant 0 : i32
    %c0_i32_0 = arith.constant 0 : i32
    return %arg0, %c0_i32 : i32, i32
  }
}

</mosaic_0001>

<llo_original>
// kernel: tpu_custom_call.1
$region0: #{tpu_custom_call.1}
  #allocation0 [shape = 'u32[]', space=smem, size = 0x4, offset = 0x4, fixed_abs, tag = 'smem constant byte address 0x4 - core index']
  #allocation1 [shape = 'u32[72,128]{1,0:T(1,128)}', space=vmem, size = 0x9000, scoped, tag = 'internal scratch']
  %s0 = inlined_call_operand.vmem [shape: f32[8,32], index: 0, kind: input, shape index: {}]
  %s1 = inlined_call_operand.vmem [shape: f32[88,32], index: 1, kind: input, shape index: {}]
  %s2 = inlined_call_operand.hbm [shape: f32[8,32], index: 2, kind: output, shape index: {}]
  %s3 = sld [smem:[#allocation0]]
  $region18: #{tpu_custom_call.1} parent=0
    _
  %s5 = ssub.s32 1, %s3
  %s6 = scalar_select 0, %s5, %s3
  $region1: #{tpu_custom_call.1} parent=0
    #allocation2 [shape = 'u8[4096]{0}', space=vmem, size = 0x1000, scoped, tag = 'output window, operand 0, single buffered']
    #allocation3 [shape = 's32[1]{0}', space=sflag, size = 0x4, scoped, tag = 'scoped memory for tpu_custom_call.1']
    %7 = vsyncpa [#allocation3], 0
    // Predicated region
    $region2: #{tpu_custom_call.1} parent=1 // pred_check
      _
    $region3: #{tpu_custom_call.1} parent=1 // pred_check_branch
      %9 = sbr.rel (0) target = $region5
    $region4: #{tpu_custom_call.1} parent=1 // pred_region
      _
    $region5: #{tpu_custom_call.1} parent=1 // pred_fallthru
      _
    // Predicated region
    $region6: #{tpu_custom_call.1} parent=1 // pred_check
      _
    $region7: #{tpu_custom_call.1} parent=1 // pred_check_branch
      %11 = sbr.rel (0) target = $region9
    $region8: #{tpu_custom_call.1} parent=1 // pred_region
      _
    $region9: #{tpu_custom_call.1} parent=1 // pred_fallthru
      _
    %v12 = vld [vmem:[%s0] sm:$0xff]
    %v13 = vld [vmem:[%s1] sm:$0xff]
    %v14 = vld [vmem:[%s1 + $0x8] sm:$0xff]
    %v15 = vld [vmem:[%s1 + $0x10] sm:$0xff]
    %v16 = vld [vmem:[%s1 + $0x18] sm:$0xff]
    %v17 = vld [vmem:[%s1 + $0x50] sm:$0x1]
    %v18 = vperm.slane %v17, 0
    %vm19 = vcmask 261120
    %v21 = vsel %vm19, %v12, 0
    %23 = vmatpush.msra.mxu0 0.0
    %24 = vmatpush.msra.mxu0 0.0
    %25 = vmatpush.msra.mxu0 0.0
    %26 = vmatpush.msra.mxu0 0.0
    %27 = vmatpush.msra.mxu0 0.0
    %28 = vmatpush.msra.mxu0 0.0
    %29 = vmatpush.msra.mxu0 0.0
    %30 = vmatpush.msra.mxu0 0.0
    %31 = vmatpush.msra.mxu0 0.0
    %32 = vmatpush.msra.mxu0 0.0
    %33 = vmatpush.msra.mxu0 0.0
    %34 = vmatpush.msra.mxu0 0.0
    %35 = vmatpush.msra.mxu0 %v16
    %36 = vmatpush.msra.mxu0 %v15
    %37 = vmatpush.msra.mxu0 %v14
    %38 = vmatpush.msra.mxu0 %v13
    %39 = vmatmul.f32.gmra.mxu0 %v21
    %v40 = vpop.f32.mrf.mxu0
    %v41 = vadd.f32 %v18, %v40
    %42 = vdwg.mxu0
    %v43 = vmax.f32 %v41, 0.0
    %v44 = vld [vmem:[%s1 + $0x20] sm:$0xff]
    %v45 = vld [vmem:[%s1 + $0x28] sm:$0xff]
    %v46 = vld [vmem:[%s1 + $0x30] sm:$0xff]
    %v47 = vld [vmem:[%s1 + $0x38] sm:$0xff]
    %v48 = vld [vmem:[%s1 + $0x51] sm:$0x1]
    %v49 = vperm.slane %v48, 0
    %v51 = vsel %vm19, %v43, 0
    %53 = vmatpush.msra.mxu0 0.0
    %54 = vmatpush.msra.mxu0 0.0
    %55 = vmatpush.msra.mxu0 0.0
    %56 = vmatpush.msra.mxu0 0.0
    %57 = vmatpush.msra.mxu0 0.0
    %58 = vmatpush.msra.mxu0 0.0
    %59 = vmatpush.msra.mxu0 0.0
    %60 = vmatpush.msra.mxu0 0.0
    %61 = vmatpush.msra.mxu0 0.0
    %62 = vmatpush.msra.mxu0 0.0
    %63 = vmatpush.msra.mxu0 0.0
    %64 = vmatpush.msra.mxu0 0.0
    %65 = vmatpush.msra.mxu0 %v47
    %66 = vmatpush.msra.mxu0 %v46
    %67 = vmatpush.msra.mxu0 %v45
    %68 = vmatpush.msra.mxu0 %v44
    %69 = vmatmul.f32.gmra.mxu0 %v51
    %v70 = vpop.f32.mrf.mxu0
    %v71 = vadd.f32 %v49, %v70
    %72 = vdwg.mxu0
    %v73 = vmax.f32 %v71, 0.0
    %v74 = vld [vmem:[%s1 + $0x40] sm:$0xff]
    %v75 = vld [vmem:[%s1 + $0x48] sm:$0xff]
    %v76 = vld [vmem:[%s1 + $0x52] sm:$0x1]
    %v77 = vperm.slane %v76, 0
    %vm78 = vcmask 130048
    %v80 = vsel %vm78, %v73, 0
    %82 = vmatpush.msra.mxu0 0.0
    %83 = vmatpush.msra.mxu0 0.0
    %84 = vmatpush.msra.mxu0 0.0
    %85 = vmatpush.msra.mxu0 0.0
    %86 = vmatpush.msra.mxu0 0.0
    %87 = vmatpush.msra.mxu0 0.0
    %88 = vmatpush.msra.mxu0 0.0
    %89 = vmatpush.msra.mxu0 0.0
    %90 = vmatpush.msra.mxu0 0.0
    %91 = vmatpush.msra.mxu0 0.0
    %92 = vmatpush.msra.mxu0 0.0
    %93 = vmatpush.msra.mxu0 0.0
    %94 = vmatpush.msra.mxu0 0.0
    %95 = vmatpush.msra.mxu0 0.0
    %96 = vmatpush.msra.mxu0 %v75
    %97 = vmatpush.msra.mxu0 %v74
    %98 = vmatmul.f32.gmra.mxu0 %v80
    %v99 = vpop.f32.mrf.mxu0
    %v100 = vadd.f32 %v77, %v99
    %101 = vdwg.mxu0
    %v102 = vsel %vm78, %v100, -inf
    %103 = vmax.xlane.f32.xlu0 %v102
    %v104 = vpop.xlane.xlu0 %103
    %v105 = vsub.f32 %v100, %v104
    %v106 = vmul.f32 %v105, 1.442695
    %v107 = vpow.pop %v106
    %v108 = vsel %vm78, %v107, 0.0
    %109 = vadd.xlane.f32.xlu0 %v108
    %v110 = vpop.xlane.xlu0 %109
    %v111 = vrcp.pop %v110
    %v112 = vmul.f32 %v107, %v111
    %vm113 = vcmask 261248
    %v114 = vsel %vm113, %v71, -inf
    %115 = vmax.xlane.f32.xlu0 %v114
    %v116 = vpop.xlane.xlu0 %115
    %v117 = vsub.f32 %v71, %v116
    %v118 = vmul.f32 %v117, 1.442695
    %v119 = vpow.pop %v118
    %121 = vrot.lane.b32.xlu0 %v119, 112
    %v122 = vpop.permute.xlu0 %121
    %v124 = vsel %vm78, %v122, 0.0
    %125 = vadd.xlane.f32.xlu0 %v124
    %v126 = vpop.xlane.xlu0 %125
    %v127 = vrcp.pop %v126
    %v128 = vmul.f32 %v119, %v127
    %v129 = vsel %vm78, %v112, %v128
    %130 = vst.msk [vmem:[#allocation2] sm:$0xff] %vm19, %v129
    // Predicated region
    $region10: #{tpu_custom_call.1} parent=1 // pred_check
      _
    $region11: #{tpu_custom_call.1} parent=1 // pred_check_branch
      %132 = sbr.rel (0) target = $region13
    $region12: #{tpu_custom_call.1} parent=1 // pred_region
      %134 = vsyncadd [#allocation3], 0
      %s136 = sshll.u32 [#allocation2], 4
      %s137 = int_to_ptr.vmem [resolvable:$true] %s136
      %s138 = sshll.u32 %s2, 4
      %s139 = int_to_ptr.hbm [resolvable:$true] %s138
      %141 = dma.vmem_to_hbm [thread:$0]  %s137, 128, %s139, [#allocation3]
    $region13: #{tpu_custom_call.1} parent=1 // pred_fallthru
      _
    // Predicated region
    $region14: #{tpu_custom_call.1} parent=1 // pred_check
      _
    $region15: #{tpu_custom_call.1} parent=1 // pred_check_branch
      %143 = sbr.rel (0) target = $region17
    $region16: #{tpu_custom_call.1} parent=1 // pred_region
      %145 = dma.done [#allocation3], 128
    $region17: #{tpu_custom_call.1} parent=1 // pred_fallthru
      _
    %146 = vsyncpa [#allocation3], 1

</llo_original>
